<compile_context>
chip_gen: v7x
topology: tpu7x:2x2x1
jax: 0.10.0
libtpu: 0.0.40
codegen_flags: <defaults>
</compile_context>

<pallas_src>
import math
import functools

import jax
import jax.numpy as jnp
from jax.experimental import pallas as pl
from jax.experimental.pallas import tpu as pltpu

_SUBLANE = 8


def _hard_sigmoid(x):
    # hard_sigmoid(x) = clip(0.2*x + 0.5, 0, 1)  (Theano-style, matches the module's ref)
    return jnp.clip(0.2 * x + 0.5, 0.0, 1.0)


def _lstm_kernel(x_ref, w_ref, hc0_ref, out_ref, *,
                 seq_len, batch_pad, input_size, hidden_size, matmul_dtype):
    T, B, D, H = seq_len, batch_pad, input_size, hidden_size

    # ---- one-shot loads (few KB; live in vregs for the whole kernel) ----
    packed = w_ref[...]                   # (H + D + 1, 4H) = [W_hh^T ; W_ih^T ; bias]
    whh = packed[0:H, :]                  # (H, 4H)  row offset 0   (sublane aligned)
    wih = packed[H:H + D, :]              # (D, 4H)  row offset H   (sublane aligned)
    bias = packed[H + D:H + D + 1, :]     # (1, 4H)  row offset H+D (sublane aligned)

    hc = hc0_ref[...]                     # (2B, H)
    h = hc[0:B, :]                        # (B, H)
    c = hc[B:2 * B, :]                    # (B, H)

    # Input projection for ALL timesteps in a single MXU call, bias folded in here.
    xw = jnp.dot(x_ref[...].astype(matmul_dtype), wih.astype(matmul_dtype),
                 preferred_element_type=jnp.float32) + bias          # (T*B, 4H)

    whh_mm = whh.astype(matmul_dtype)

    # T is small and static: fully unrolled recurrence, h/c carried as values (vregs).
    # (Perf note: pltpu.matmul_push_rhs/matmul_acc_lhs could keep W_hh staged in the MXU
    #  across steps; kept as jnp.dot here for robust lowering at these tiny shapes.)
    hs = []
    for t in range(T):
        # With B = 8 each xw row-slice is exactly one aligned (8, 128) vreg.
        gates = xw[t * B:(t + 1) * B, :] + jnp.dot(
            h.astype(matmul_dtype), whh_mm, preferred_element_type=jnp.float32)  # (B, 4H)

        sig = _hard_sigmoid(gates)                 # VPU, lane-dense full 4H tile
        i_g = sig[:, 0 * H:1 * H]
        f_g = sig[:, 1 * H:2 * H]
        o_g = sig[:, 3 * H:4 * H]
        g_g = jnp.tanh(gates[:, 2 * H:3 * H])      # EUP, cell-gate quarter only

        c = f_g * c + i_g * g_g
        h = o_g * jnp.tanh(c)
        hs.append(h)

    # Single bulk store / one writeback DMA: rows [0:T] are the per-step h's, row T is c_n.
    out_ref[...] = jnp.concatenate([jnp.stack(hs, axis=0), c[None]], axis=0)


def lstm_hard_sigmoid(x, w_ih, w_hh, b_ih, b_hh, h0=None, c0=None, *,
                      matmul_dtype=jnp.float32):
    """Forward of LSTMHardSigmoid (num_layers=1, unidirectional, batch_first=False).

    x:    (T, B, input_size)  float32
    w_ih: (4H, input_size), w_hh: (4H, H), b_ih/b_hh: (4H,)
    Returns (output (T,B,H), (h_n (1,B,H), c_n (1,B,H))).
    """
    T, B, D = x.shape
    H = w_hh.shape[1]
    assert w_ih.shape == (4 * H, D)

    if h0 is None:
        h0 = jnp.zeros((B, H), jnp.float32)
    if c0 is None:
        c0 = jnp.zeros((B, H), jnp.float32)

    # --- layout prep (cheap XLA ops, outside the kernel) ---
    # Pad batch to a full sublane group so every in-kernel tile/slice/store is aligned.
    B_pad = max(_SUBLANE, -(-B // _SUBLANE) * _SUBLANE)
    pad_b = B_pad - B

    x_p = jnp.pad(jnp.asarray(x, jnp.float32), ((0, 0), (0, pad_b), (0, 0)))
    x2d = x_p.reshape(T * B_pad, D)                                   # (T*B_pad, D)

    h0_p = jnp.pad(jnp.asarray(h0, jnp.float32), ((0, pad_b), (0, 0)))
    c0_p = jnp.pad(jnp.asarray(c0, jnp.float32), ((0, pad_b), (0, 0)))
    hc0 = jnp.concatenate([h0_p, c0_p], axis=0)                       # (2*B_pad, H)

    # Pack all weight-side operands into ONE array (one inbound DMA), ordered so every
    # in-kernel slice offset (0, H, H+D) is a multiple of the 8-row sublane group.
    whh_t = jnp.asarray(w_hh, jnp.float32).T                          # (H, 4H)
    wih_t = jnp.asarray(w_ih, jnp.float32).T                          # (D, 4H)
    bias = (jnp.asarray(b_ih, jnp.float32)
            + jnp.asarray(b_hh, jnp.float32)).reshape(1, 4 * H)       # (1, 4H)
    packed_w = jnp.concatenate([whh_t, wih_t, bias], axis=0)          # (H+D+1, 4H)

    kernel = functools.partial(_lstm_kernel, seq_len=T, batch_pad=B_pad,
                               input_size=D, hidden_size=H,
                               matmul_dtype=matmul_dtype)

    vmem = pl.BlockSpec(memory_space=pltpu.MemorySpace.VMEM)
    out_full = pl.pallas_call(
        kernel,
        out_shape=jax.ShapeDtypeStruct((T + 1, B_pad, H), jnp.float32),
        in_specs=[vmem, vmem, vmem],
        out_specs=vmem,
    )(x2d, packed_w, hc0)

    out = out_full[:T, :B, :]
    h_n = out_full[T - 1:T, :B, :]        # h_n is exactly the last output step
    c_n = out_full[T:T + 1, :B, :]        # c_n rides in the trailing row of the same slab
    return out, (h_n, c_n)


def _reference_lstm(x, w_ih, w_hh, b_ih, b_hh, h0, c0):
    """Pure-JAX reference matching the PyTorch LSTMCell with hard-sigmoid gates."""
    H = w_hh.shape[1]

    def step(carry, xt):
        h, c = carry
        gates = xt @ w_ih.T + b_ih + h @ w_hh.T + b_hh
        i = _hard_sigmoid(gates[:, 0 * H:1 * H])
        f = _hard_sigmoid(gates[:, 1 * H:2 * H])
        g = jnp.tanh(gates[:, 2 * H:3 * H])
        o = _hard_sigmoid(gates[:, 3 * H:4 * H])
        c = f * c + i * g
        h = o * jnp.tanh(c)
        return (h, c), h

    (hf, cf), ys = jax.lax.scan(step, (h0, c0), x)
    return ys, (hf[None], cf[None])


if __name__ == "__main__":
    # Module hyperparameters: input_size=16, hidden_size=32, num_layers=1,
    # bias=True, batch_first=False, bidirectional=False.
    # TODO(synk): PackedSequence / variable-length, multi-layer and bidirectional paths of
    # the original module are not implemented (default config is single-layer, unidirectional).
    T, B, D, H = 8, 2, 16, 32

    key = jax.random.PRNGKey(0)
    kx, k1, k2, k3, k4 = jax.random.split(key, 5)

    stdv = 1.0 / math.sqrt(H)  # matches reset_parameters()
    x = jax.random.normal(kx, (T, B, D), jnp.float32)
    w_ih = jax.random.uniform(k1, (4 * H, D), jnp.float32, -stdv, stdv)
    w_hh = jax.random.uniform(k2, (4 * H, H), jnp.float32, -stdv, stdv)
    b_ih = jax.random.uniform(k3, (4 * H,), jnp.float32, -stdv, stdv)
    b_hh = jax.random.uniform(k4, (4 * H,), jnp.float32, -stdv, stdv)

    h0 = jnp.zeros((B, H), jnp.float32)  # hx defaults to zeros in forward()
    c0 = jnp.zeros((B, H), jnp.float32)

    out, (h_n, c_n) = lstm_hard_sigmoid(x, w_ih, w_hh, b_ih, b_hh, h0, c0)
    jax.block_until_ready((out, h_n, c_n))

    # Numerical check against a pure-JAX reference of the same semantics.
    ref_out, (ref_h, ref_c) = _reference_lstm(x, w_ih, w_hh, b_ih, b_hh, h0, c0)
    assert out.shape == (T, B, H) and h_n.shape == (1, B, H) and c_n.shape == (1, B, H)
    assert jnp.allclose(out, ref_out, atol=1e-5, rtol=1e-5)
    assert jnp.allclose(h_n, ref_h, atol=1e-5, rtol=1e-5)
    assert jnp.allclose(c_n, ref_c, atol=1e-5, rtol=1e-5)

    print("KERNEL_OK")
</pallas_src>

<mosaic_0001>
module attributes {stable_mosaic.version = 11 : i64} {
  func.func @_lstm_kernel(%arg0: memref<64x16xf32, #tpu.memory_space<vmem>>, %arg1: memref<49x128xf32, #tpu.memory_space<vmem>>, %arg2: memref<16x32xf32, #tpu.memory_space<vmem>>, %arg3: memref<9x8x32xf32, #tpu.memory_space<vmem>>) attributes {dimension_semantics = [], scalar_prefetch = 0 : i64, scratch_operands = 0 : i64, tpu.core_type = #tpu.core_type<tc>} {
    %c0 = arith.constant 0 : index
    %c0_0 = arith.constant 0 : index
    %0 = vector.load %arg1[%c0, %c0_0] : memref<49x128xf32, #tpu.memory_space<vmem>>, vector<49x128xf32>
    %1 = vector.extract_strided_slice %0 {offsets = [0, 0], sizes = [32, 128], strides = [1, 1]} : vector<49x128xf32> to vector<32x128xf32>
    %2 = vector.extract_strided_slice %0 {offsets = [32, 0], sizes = [16, 128], strides = [1, 1]} : vector<49x128xf32> to vector<16x128xf32>
    %3 = vector.extract_strided_slice %0 {offsets = [48, 0], sizes = [1, 128], strides = [1, 1]} : vector<49x128xf32> to vector<1x128xf32>
    %c0_1 = arith.constant 0 : index
    %c0_2 = arith.constant 0 : index
    %4 = vector.load %arg2[%c0_1, %c0_2] : memref<16x32xf32, #tpu.memory_space<vmem>>, vector<16x32xf32>
    %5 = vector.extract_strided_slice %4 {offsets = [0, 0], sizes = [8, 32], strides = [1, 1]} : vector<16x32xf32> to vector<8x32xf32>
    %6 = vector.extract_strided_slice %4 {offsets = [8, 0], sizes = [8, 32], strides = [1, 1]} : vector<16x32xf32> to vector<8x32xf32>
    %c0_3 = arith.constant 0 : index
    %c0_4 = arith.constant 0 : index
    %7 = vector.load %arg0[%c0_3, %c0_4] : memref<64x16xf32, #tpu.memory_space<vmem>>, vector<64x16xf32>
    %cst = arith.constant dense<0.000000e+00> : vector<64x128xf32>
    %8 = tpu.matmul %7, %2, %cst {dimension_numbers = #tpu.dot_dimension_numbers<[1], [0], [0], [1], [0, 0, 1, 1], [], []>} : vector<64x16xf32>, vector<16x128xf32>, vector<64x128xf32> -> vector<64x128xf32>
    %9 = vector.broadcast %3 : vector<1x128xf32> to vector<64x128xf32>
    %10 = arith.addf %8, %9 : vector<64x128xf32>
    %11 = vector.extract_strided_slice %10 {offsets = [0, 0], sizes = [8, 128], strides = [1, 1]} : vector<64x128xf32> to vector<8x128xf32>
    %cst_5 = arith.constant dense<0.000000e+00> : vector<8x128xf32>
    %12 = tpu.matmul %5, %1, %cst_5 {dimension_numbers = #tpu.dot_dimension_numbers<[1], [0], [0], [1], [0, 0, 1, 1], [], []>} : vector<8x32xf32>, vector<32x128xf32>, vector<8x128xf32> -> vector<8x128xf32>
    %13 = arith.addf %11, %12 : vector<8x128xf32>
    %cst_6 = arith.constant 2.000000e-01 : f32
    %14 = vector.broadcast %cst_6 : f32 to vector<8x128xf32>
    %15 = arith.mulf %14, %13 : vector<8x128xf32>
    %cst_7 = arith.constant 5.000000e-01 : f32
    %16 = vector.broadcast %cst_7 : f32 to vector<8x128xf32>
    %17 = arith.addf %15, %16 : vector<8x128xf32>
    %cst_8 = arith.constant 0.000000e+00 : f32
    %cst_9 = arith.constant 1.000000e+00 : f32
    %18 = vector.broadcast %cst_8 : f32 to vector<8x128xf32>
    %19 = arith.maximumf %18, %17 : vector<8x128xf32>
    %20 = vector.broadcast %cst_9 : f32 to vector<8x128xf32>
    %21 = arith.minimumf %20, %19 : vector<8x128xf32>
    %22 = vector.extract_strided_slice %21 {offsets = [0, 0], sizes = [8, 32], strides = [1, 1]} : vector<8x128xf32> to vector<8x32xf32>
    %23 = vector.extract_strided_slice %21 {offsets = [0, 32], sizes = [8, 32], strides = [1, 1]} : vector<8x128xf32> to vector<8x32xf32>
    %24 = vector.extract_strided_slice %21 {offsets = [0, 96], sizes = [8, 32], strides = [1, 1]} : vector<8x128xf32> to vector<8x32xf32>
    %25 = vector.extract_strided_slice %13 {offsets = [0, 64], sizes = [8, 32], strides = [1, 1]} : vector<8x128xf32> to vector<8x32xf32>
    %26 = math.tanh %25 : vector<8x32xf32>
    %27 = arith.mulf %23, %6 : vector<8x32xf32>
    %28 = arith.mulf %22, %26 : vector<8x32xf32>
    %29 = arith.addf %27, %28 : vector<8x32xf32>
    %30 = math.tanh %29 : vector<8x32xf32>
    %31 = arith.mulf %24, %30 : vector<8x32xf32>
    %32 = vector.extract_strided_slice %10 {offsets = [8, 0], sizes = [8, 128], strides = [1, 1]} : vector<64x128xf32> to vector<8x128xf32>
    %cst_10 = arith.constant dense<0.000000e+00> : vector<8x128xf32>
    %33 = tpu.matmul %31, %1, %cst_10 {dimension_numbers = #tpu.dot_dimension_numbers<[1], [0], [0], [1], [0, 0, 1, 1], [], []>} : vector<8x32xf32>, vector<32x128xf32>, vector<8x128xf32> -> vector<8x128xf32>
    %34 = arith.addf %32, %33 : vector<8x128xf32>
    %cst_11 = arith.constant 2.000000e-01 : f32
    %35 = vector.broadcast %cst_11 : f32 to vector<8x128xf32>
    %36 = arith.mulf %35, %34 : vector<8x128xf32>
    %cst_12 = arith.constant 5.000000e-01 : f32
    %37 = vector.broadcast %cst_12 : f32 to vector<8x128xf32>
    %38 = arith.addf %36, %37 : vector<8x128xf32>
    %cst_13 = arith.constant 0.000000e+00 : f32
    %cst_14 = arith.constant 1.000000e+00 : f32
    %39 = vector.broadcast %cst_13 : f32 to vector<8x128xf32>
    %40 = arith.maximumf %39, %38 : vector<8x128xf32>
    %41 = vector.broadcast %cst_14 : f32 to vector<8x128xf32>
    %42 = arith.minimumf %41, %40 : vector<8x128xf32>
    %43 = vector.extract_strided_slice %42 {offsets = [0, 0], sizes = [8, 32], strides = [1, 1]} : vector<8x128xf32> to vector<8x32xf32>
    %44 = vector.extract_strided_slice %42 {offsets = [0, 32], sizes = [8, 32], strides = [1, 1]} : vector<8x128xf32> to vector<8x32xf32>
    %45 = vector.extract_strided_slice %42 {offsets = [0, 96], sizes = [8, 32], strides = [1, 1]} : vector<8x128xf32> to vector<8x32xf32>
    %46 = vector.extract_strided_slice %34 {offsets = [0, 64], sizes = [8, 32], strides = [1, 1]} : vector<8x128xf32> to vector<8x32xf32>
    %47 = math.tanh %46 : vector<8x32xf32>
    %48 = arith.mulf %44, %29 : vector<8x32xf32>
    %49 = arith.mulf %43, %47 : vector<8x32xf32>
    %50 = arith.addf %48, %49 : vector<8x32xf32>
    %51 = math.tanh %50 : vector<8x32xf32>
    %52 = arith.mulf %45, %51 : vector<8x32xf32>
    %53 = vector.extract_strided_slice %10 {offsets = [16, 0], sizes = [8, 128], strides = [1, 1]} : vector<64x128xf32> to vector<8x128xf32>
    %cst_15 = arith.constant dense<0.000000e+00> : vector<8x128xf32>
    %54 = tpu.matmul %52, %1, %cst_15 {dimension_numbers = #tpu.dot_dimension_numbers<[1], [0], [0], [1], [0, 0, 1, 1], [], []>} : vector<8x32xf32>, vector<32x128xf32>, vector<8x128xf32> -> vector<8x128xf32>
    %55 = arith.addf %53, %54 : vector<8x128xf32>
    %cst_16 = arith.constant 2.000000e-01 : f32
    %56 = vector.broadcast %cst_16 : f32 to vector<8x128xf32>
    %57 = arith.mulf %56, %55 : vector<8x128xf32>
    %cst_17 = arith.constant 5.000000e-01 : f32
    %58 = vector.broadcast %cst_17 : f32 to vector<8x128xf32>
    %59 = arith.addf %57, %58 : vector<8x128xf32>
    %cst_18 = arith.constant 0.000000e+00 : f32
    %cst_19 = arith.constant 1.000000e+00 : f32
    %60 = vector.broadcast %cst_18 : f32 to vector<8x128xf32>
    %61 = arith.maximumf %60, %59 : vector<8x128xf32>
    %62 = vector.broadcast %cst_19 : f32 to vector<8x128xf32>
    %63 = arith.minimumf %62, %61 : vector<8x128xf32>
    %64 = vector.extract_strided_slice %63 {offsets = [0, 0], sizes = [8, 32], strides = [1, 1]} : vector<8x128xf32> to vector<8x32xf32>
    %65 = vector.extract_strided_slice %63 {offsets = [0, 32], sizes = [8, 32], strides = [1, 1]} : vector<8x128xf32> to vector<8x32xf32>
    %66 = vector.extract_strided_slice %63 {offsets = [0, 96], sizes = [8, 32], strides = [1, 1]} : vector<8x128xf32> to vector<8x32xf32>
    %67 = vector.extract_strided_slice %55 {offsets = [0, 64], sizes = [8, 32], strides = [1, 1]} : vector<8x128xf32> to vector<8x32xf32>
    %68 = math.tanh %67 : vector<8x32xf32>
    %69 = arith.mulf %65, %50 : vector<8x32xf32>
    %70 = arith.mulf %64, %68 : vector<8x32xf32>
    %71 = arith.addf %69, %70 : vector<8x32xf32>
    %72 = math.tanh %71 : vector<8x32xf32>
    %73 = arith.mulf %66, %72 : vector<8x32xf32>
    %74 = vector.extract_strided_slice %10 {offsets = [24, 0], sizes = [8, 128], strides = [1, 1]} : vector<64x128xf32> to vector<8x128xf32>
    %cst_20 = arith.constant dense<0.000000e+00> : vector<8x128xf32>
    %75 = tpu.matmul %73, %1, %cst_20 {dimension_numbers = #tpu.dot_dimension_numbers<[1], [0], [0], [1], [0, 0, 1, 1], [], []>} : vector<8x32xf32>, vector<32x128xf32>, vector<8x128xf32> -> vector<8x128xf32>
    %76 = arith.addf %74, %75 : vector<8x128xf32>
    %cst_21 = arith.constant 2.000000e-01 : f32
    %77 = vector.broadcast %cst_21 : f32 to vector<8x128xf32>
    %78 = arith.mulf %77, %76 : vector<8x128xf32>
    %cst_22 = arith.constant 5.000000e-01 : f32
    %79 = vector.broadcast %cst_22 : f32 to vector<8x128xf32>
    %80 = arith.addf %78, %79 : vector<8x128xf32>
    %cst_23 = arith.constant 0.000000e+00 : f32
    %cst_24 = arith.constant 1.000000e+00 : f32
    %81 = vector.broadcast %cst_23 : f32 to vector<8x128xf32>
    %82 = arith.maximumf %81, %80 : vector<8x128xf32>
    %83 = vector.broadcast %cst_24 : f32 to vector<8x128xf32>
    %84 = arith.minimumf %83, %82 : vector<8x128xf32>
    %85 = vector.extract_strided_slice %84 {offsets = [0, 0], sizes = [8, 32], strides = [1, 1]} : vector<8x128xf32> to vector<8x32xf32>
    %86 = vector.extract_strided_slice %84 {offsets = [0, 32], sizes = [8, 32], strides = [1, 1]} : vector<8x128xf32> to vector<8x32xf32>
    %87 = vector.extract_strided_slice %84 {offsets = [0, 96], sizes = [8, 32], strides = [1, 1]} : vector<8x128xf32> to vector<8x32xf32>
    %88 = vector.extract_strided_slice %76 {offsets = [0, 64], sizes = [8, 32], strides = [1, 1]} : vector<8x128xf32> to vector<8x32xf32>
    %89 = math.tanh %88 : vector<8x32xf32>
    %90 = arith.mulf %86, %71 : vector<8x32xf32>
    %91 = arith.mulf %85, %89 : vector<8x32xf32>
    %92 = arith.addf %90, %91 : vector<8x32xf32>
    %93 = math.tanh %92 : vector<8x32xf32>
    %94 = arith.mulf %87, %93 : vector<8x32xf32>
    %95 = vector.extract_strided_slice %10 {offsets = [32, 0], sizes = [8, 128], strides = [1, 1]} : vector<64x128xf32> to vector<8x128xf32>
    %cst_25 = arith.constant dense<0.000000e+00> : vector<8x128xf32>
    %96 = tpu.matmul %94, %1, %cst_25 {dimension_numbers = #tpu.dot_dimension_numbers<[1], [0], [0], [1], [0, 0, 1, 1], [], []>} : vector<8x32xf32>, vector<32x128xf32>, vector<8x128xf32> -> vector<8x128xf32>
    %97 = arith.addf %95, %96 : vector<8x128xf32>
    %cst_26 = arith.constant 2.000000e-01 : f32
    %98 = vector.broadcast %cst_26 : f32 to vector<8x128xf32>
    %99 = arith.mulf %98, %97 : vector<8x128xf32>
    %cst_27 = arith.constant 5.000000e-01 : f32
    %100 = vector.broadcast %cst_27 : f32 to vector<8x128xf32>
    %101 = arith.addf %99, %100 : vector<8x128xf32>
    %cst_28 = arith.constant 0.000000e+00 : f32
    %cst_29 = arith.constant 1.000000e+00 : f32
    %102 = vector.broadcast %cst_28 : f32 to vector<8x128xf32>
    %103 = arith.maximumf %102, %101 : vector<8x128xf32>
    %104 = vector.broadcast %cst_29 : f32 to vector<8x128xf32>
    %105 = arith.minimumf %104, %103 : vector<8x128xf32>
    %106 = vector.extract_strided_slice %105 {offsets = [0, 0], sizes = [8, 32], strides = [1, 1]} : vector<8x128xf32> to vector<8x32xf32>
    %107 = vector.extract_strided_slice %105 {offsets = [0, 32], sizes = [8, 32], strides = [1, 1]} : vector<8x128xf32> to vector<8x32xf32>
    %108 = vector.extract_strided_slice %105 {offsets = [0, 96], sizes = [8, 32], strides = [1, 1]} : vector<8x128xf32> to vector<8x32xf32>
    %109 = vector.extract_strided_slice %97 {offsets = [0, 64], sizes = [8, 32], strides = [1, 1]} : vector<8x128xf32> to vector<8x32xf32>
    %110 = math.tanh %109 : vector<8x32xf32>
    %111 = arith.mulf %107, %92 : vector<8x32xf32>
    %112 = arith.mulf %106, %110 : vector<8x32xf32>
    %113 = arith.addf %111, %112 : vector<8x32xf32>
    %114 = math.tanh %113 : vector<8x32xf32>
    %115 = arith.mulf %108, %114 : vector<8x32xf32>
    %116 = vector.extract_strided_slice %10 {offsets = [40, 0], sizes = [8, 128], strides = [1, 1]} : vector<64x128xf32> to vector<8x128xf32>
    %cst_30 = arith.constant dense<0.000000e+00> : vector<8x128xf32>
    %117 = tpu.matmul %115, %1, %cst_30 {dimension_numbers = #tpu.dot_dimension_numbers<[1], [0], [0], [1], [0, 0, 1, 1], [], []>} : vector<8x32xf32>, vector<32x128xf32>, vector<8x128xf32> -> vector<8x128xf32>
    %118 = arith.addf %116, %117 : vector<8x128xf32>
    %cst_31 = arith.constant 2.000000e-01 : f32
    %119 = vector.broadcast %cst_31 : f32 to vector<8x128xf32>
    %120 = arith.mulf %119, %118 : vector<8x128xf32>
    %cst_32 = arith.constant 5.000000e-01 : f32
    %121 = vector.broadcast %cst_32 : f32 to vector<8x128xf32>
    %122 = arith.addf %120, %121 : vector<8x128xf32>
    %cst_33 = arith.constant 0.000000e+00 : f32
    %cst_34 = arith.constant 1.000000e+00 : f32
    %123 = vector.broadcast %cst_33 : f32 to vector<8x128xf32>
    %124 = arith.maximumf %123, %122 : vector<8x128xf32>
    %125 = vector.broadcast %cst_34 : f32 to vector<8x128xf32>
    %126 = arith.minimumf %125, %124 : vector<8x128xf32>
    %127 = vector.extract_strided_slice %126 {offsets = [0, 0], sizes = [8, 32], strides = [1, 1]} : vector<8x128xf32> to vector<8x32xf32>
    %128 = vector.extract_strided_slice %126 {offsets = [0, 32], sizes = [8, 32], strides = [1, 1]} : vector<8x128xf32> to vector<8x32xf32>
    %129 = vector.extract_strided_slice %126 {offsets = [0, 96], sizes = [8, 32], strides = [1, 1]} : vector<8x128xf32> to vector<8x32xf32>
    %130 = vector.extract_strided_slice %118 {offsets = [0, 64], sizes = [8, 32], strides = [1, 1]} : vector<8x128xf32> to vector<8x32xf32>
    %131 = math.tanh %130 : vector<8x32xf32>
    %132 = arith.mulf %128, %113 : vector<8x32xf32>
    %133 = arith.mulf %127, %131 : vector<8x32xf32>
    %134 = arith.addf %132, %133 : vector<8x32xf32>
    %135 = math.tanh %134 : vector<8x32xf32>
    %136 = arith.mulf %129, %135 : vector<8x32xf32>
    %137 = vector.extract_strided_slice %10 {offsets = [48, 0], sizes = [8, 128], strides = [1, 1]} : vector<64x128xf32> to vector<8x128xf32>
    %cst_35 = arith.constant dense<0.000000e+00> : vector<8x128xf32>
    %138 = tpu.matmul %136, %1, %cst_35 {dimension_numbers = #tpu.dot_dimension_numbers<[1], [0], [0], [1], [0, 0, 1, 1], [], []>} : vector<8x32xf32>, vector<32x128xf32>, vector<8x128xf32> -> vector<8x128xf32>
    %139 = arith.addf %137, %138 : vector<8x128xf32>
    %cst_36 = arith.constant 2.000000e-01 : f32
    %140 = vector.broadcast %cst_36 : f32 to vector<8x128xf32>
    %141 = arith.mulf %140, %139 : vector<8x128xf32>
    %cst_37 = arith.constant 5.000000e-01 : f32
    %142 = vector.broadcast %cst_37 : f32 to vector<8x128xf32>
    %143 = arith.addf %141, %142 : vector<8x128xf32>
    %cst_38 = arith.constant 0.000000e+00 : f32
    %cst_39 = arith.constant 1.000000e+00 : f32
    %144 = vector.broadcast %cst_38 : f32 to vector<8x128xf32>
    %145 = arith.maximumf %144, %143 : vector<8x128xf32>
    %146 = vector.broadcast %cst_39 : f32 to vector<8x128xf32>
    %147 = arith.minimumf %146, %145 : vector<8x128xf32>
    %148 = vector.extract_strided_slice %147 {offsets = [0, 0], sizes = [8, 32], strides = [1, 1]} : vector<8x128xf32> to vector<8x32xf32>
    %149 = vector.extract_strided_slice %147 {offsets = [0, 32], sizes = [8, 32], strides = [1, 1]} : vector<8x128xf32> to vector<8x32xf32>
    %150 = vector.extract_strided_slice %147 {offsets = [0, 96], sizes = [8, 32], strides = [1, 1]} : vector<8x128xf32> to vector<8x32xf32>
    %151 = vector.extract_strided_slice %139 {offsets = [0, 64], sizes = [8, 32], strides = [1, 1]} : vector<8x128xf32> to vector<8x32xf32>
    %152 = math.tanh %151 : vector<8x32xf32>
    %153 = arith.mulf %149, %134 : vector<8x32xf32>
    %154 = arith.mulf %148, %152 : vector<8x32xf32>
    %155 = arith.addf %153, %154 : vector<8x32xf32>
    %156 = math.tanh %155 : vector<8x32xf32>
    %157 = arith.mulf %150, %156 : vector<8x32xf32>
    %158 = vector.extract_strided_slice %10 {offsets = [56, 0], sizes = [8, 128], strides = [1, 1]} : vector<64x128xf32> to vector<8x128xf32>
    %cst_40 = arith.constant dense<0.000000e+00> : vector<8x128xf32>
    %159 = tpu.matmul %157, %1, %cst_40 {dimension_numbers = #tpu.dot_dimension_numbers<[1], [0], [0], [1], [0, 0, 1, 1], [], []>} : vector<8x32xf32>, vector<32x128xf32>, vector<8x128xf32> -> vector<8x128xf32>
    %160 = arith.addf %158, %159 : vector<8x128xf32>
    %cst_41 = arith.constant 2.000000e-01 : f32
    %161 = vector.broadcast %cst_41 : f32 to vector<8x128xf32>
    %162 = arith.mulf %161, %160 : vector<8x128xf32>
    %cst_42 = arith.constant 5.000000e-01 : f32
    %163 = vector.broadcast %cst_42 : f32 to vector<8x128xf32>
    %164 = arith.addf %162, %163 : vector<8x128xf32>
    %cst_43 = arith.constant 0.000000e+00 : f32
    %cst_44 = arith.constant 1.000000e+00 : f32
    %165 = vector.broadcast %cst_43 : f32 to vector<8x128xf32>
    %166 = arith.maximumf %165, %164 : vector<8x128xf32>
    %167 = vector.broadcast %cst_44 : f32 to vector<8x128xf32>
    %168 = arith.minimumf %167, %166 : vector<8x128xf32>
    %169 = vector.extract_strided_slice %168 {offsets = [0, 0], sizes = [8, 32], strides = [1, 1]} : vector<8x128xf32> to vector<8x32xf32>
    %170 = vector.extract_strided_slice %168 {offsets = [0, 32], sizes = [8, 32], strides = [1, 1]} : vector<8x128xf32> to vector<8x32xf32>
    %171 = vector.extract_strided_slice %168 {offsets = [0, 96], sizes = [8, 32], strides = [1, 1]} : vector<8x128xf32> to vector<8x32xf32>
    %172 = vector.extract_strided_slice %160 {offsets = [0, 64], sizes = [8, 32], strides = [1, 1]} : vector<8x128xf32> to vector<8x32xf32>
    %173 = math.tanh %172 : vector<8x32xf32>
    %174 = arith.mulf %170, %155 : vector<8x32xf32>
    %175 = arith.mulf %169, %173 : vector<8x32xf32>
    %176 = arith.addf %174, %175 : vector<8x32xf32>
    %177 = math.tanh %176 : vector<8x32xf32>
    %178 = arith.mulf %171, %177 : vector<8x32xf32>
    %179 = vector.shape_cast %31 : vector<8x32xf32> to vector<1x8x32xf32>
    %180 = vector.shape_cast %52 : vector<8x32xf32> to vector<1x8x32xf32>
    %181 = vector.shape_cast %73 : vector<8x32xf32> to vector<1x8x32xf32>
    %182 = vector.shape_cast %94 : vector<8x32xf32> to vector<1x8x32xf32>
    %183 = vector.shape_cast %115 : vector<8x32xf32> to vector<1x8x32xf32>
    %184 = vector.shape_cast %136 : vector<8x32xf32> to vector<1x8x32xf32>
    %185 = vector.shape_cast %157 : vector<8x32xf32> to vector<1x8x32xf32>
    %186 = vector.shape_cast %178 : vector<8x32xf32> to vector<1x8x32xf32>
    %187 = tpu.concatenate %179, %180, %181, %182, %183, %184, %185, %186 in 0 : vector<1x8x32xf32>, vector<1x8x32xf32>, vector<1x8x32xf32>, vector<1x8x32xf32>, vector<1x8x32xf32>, vector<1x8x32xf32>, vector<1x8x32xf32>, vector<1x8x32xf32> -> vector<8x8x32xf32>
    %188 = vector.shape_cast %176 : vector<8x32xf32> to vector<1x8x32xf32>
    %189 = tpu.concatenate %187, %188 in 0 : vector<8x8x32xf32>, vector<1x8x32xf32> -> vector<9x8x32xf32>
    %c0_45 = arith.constant 0 : index
    %c0_46 = arith.constant 0 : index
    %c0_47 = arith.constant 0 : index
    %190 = vector.load %arg3[%c0_45, %c0_46, %c0_47] : memref<9x8x32xf32, #tpu.memory_space<vmem>>, vector<9x8x32xf32>
    tpu.vector_store %arg3[%c0_45, %c0_46, %c0_47], %189 {strides = array<i32>} : memref<9x8x32xf32, #tpu.memory_space<vmem>>, vector<9x8x32xf32>,
    return
  }
}

</mosaic_0001>

<llo_original>
// kernel: tpu_custom_call.1
$region0: #{tpu_custom_call.1}
  #allocation0 [shape = 'u32[]', space=smem, size = 0x4, offset = 0x4, fixed_abs, tag = 'smem constant byte address 0x4 - core index']
  #allocation1 [shape = 'u32[144,128]{1,0:T(1,128)}', space=vmem, size = 0x12000, scoped, tag = 'internal scratch']
  %s0 = inlined_call_operand.vmem [shape: f32[64,16], index: 0, kind: input, shape index: {}]
  %s1 = inlined_call_operand.vmem [shape: f32[49,128], index: 1, kind: input, shape index: {}]
  %s2 = inlined_call_operand.vmem [shape: f32[16,32], index: 2, kind: input, shape index: {}]
  %s3 = inlined_call_operand.hbm [shape: f32[9,8,32], index: 3, kind: output, shape index: {}]
  %s4 = sld [smem:[#allocation0]]
  $region22: #{tpu_custom_call.1} parent=0
    _
  %s6 = ssub.s32 1, %s4
  %s7 = scalar_select 0, %s6, %s4
  $region1: #{tpu_custom_call.1} parent=0
    #allocation2 [shape = 'u8[36864]{0}', space=vmem, size = 0x9000, scoped, tag = 'output window, operand 0, single buffered']
    #allocation3 [shape = 's32[1]{0}', space=sflag, size = 0x4, scoped, tag = 'scoped memory for tpu_custom_call.1']
    %8 = vsyncpa [#allocation3], 0
    // Predicated region
    $region2: #{tpu_custom_call.1} parent=1 // pred_check
      _
    $region3: #{tpu_custom_call.1} parent=1 // pred_check_branch
      %10 = sbr.rel (0) target = $region5
    $region4: #{tpu_custom_call.1} parent=1 // pred_region
      _
    $region5: #{tpu_custom_call.1} parent=1 // pred_fallthru
      _
    // Predicated region
    $region6: #{tpu_custom_call.1} parent=1 // pred_check
      _
    $region7: #{tpu_custom_call.1} parent=1 // pred_check_branch
      %12 = sbr.rel (0) target = $region9
    $region8: #{tpu_custom_call.1} parent=1 // pred_region
      _
    $region9: #{tpu_custom_call.1} parent=1 // pred_fallthru
      _
    // Predicated region
    $region10: #{tpu_custom_call.1} parent=1 // pred_check
      _
    $region11: #{tpu_custom_call.1} parent=1 // pred_check_branch
      %14 = sbr.rel (0) target = $region13
    $region12: #{tpu_custom_call.1} parent=1 // pred_region
      _
    $region13: #{tpu_custom_call.1} parent=1 // pred_fallthru
      _
    %v15 = vld [vmem:[%s1] sm:$0xff]
    %v16 = vld [vmem:[%s1 + $0x8] sm:$0xff]
    %v17 = vld [vmem:[%s1 + $0x10] sm:$0xff]
    %v18 = vld [vmem:[%s1 + $0x18] sm:$0xff]
    %v19 = vld [vmem:[%s1 + $0x20] sm:$0xff]
    %v20 = vld [vmem:[%s1 + $0x28] sm:$0xff]
    %v21 = vld [vmem:[%s1 + $0x30] sm:$0x1]
    %v22 = vld [vmem:[%s2] sm:$0xff]
    %v23 = vld [vmem:[%s2 + $0x8] sm:$0xff]
    %v24 = vld [vmem:[%s0] sm:$0xff]
    %v25 = vld [vmem:[%s0 + $0x8] sm:$0xff]
    %v26 = vld [vmem:[%s0 + $0x10] sm:$0xff]
    %v27 = vld [vmem:[%s0 + $0x18] sm:$0xff]
    %v28 = vld [vmem:[%s0 + $0x20] sm:$0xff]
    %v29 = vld [vmem:[%s0 + $0x28] sm:$0xff]
    %v30 = vld [vmem:[%s0 + $0x30] sm:$0xff]
    %v31 = vld [vmem:[%s0 + $0x38] sm:$0xff]
    %v32 = vlaneseq
    %v33 = vshrl.u32 %v32, 7
    %v34 = vsub.s32 0, %v33
    %v35 = vrot.slane %v21, %v34
    %vm36 = vcmask 130048
    %v38 = vsel %vm36, %v24, 0
    %v41 = vsel %vm36, %v25, 0
    %v44 = vsel %vm36, %v26, 0
    %v47 = vsel %vm36, %v27, 0
    %v50 = vsel %vm36, %v28, 0
    %v53 = vsel %vm36, %v29, 0
    %v56 = vsel %vm36, %v30, 0
    %v59 = vsel %vm36, %v31, 0
    %61 = vmatprep.subr.mxu0 0.0
    %62 = vmatpush1.msra.mxu0 %v19
    %63 = vmatprep.subr.mxu0 0.0
    %64 = vmatpush1.msra.mxu0 %v20
    %65 = vmatprep.subr.mxu0 0.0
    %66 = vmatpush1.msra.mxu0 0.0
    %67 = vmatprep.subr.mxu0 0.0
    %68 = vmatpush1.msra.mxu0 0.0
    %69 = vmatprep.subr.mxu0 0.0
    %70 = vmatpush1.msra.mxu0 0.0
    %71 = vmatprep.subr.mxu0 0.0
    %72 = vmatpush1.msra.mxu0 0.0
    %73 = vmatprep.subr.mxu0 0.0
    %74 = vmatpush1.msra.mxu0 0.0
    %75 = vmatprep.subr.mxu0 0.0
    %76 = vmatpush1.msra.mxu0 0.0
    %77 = vmatprep.subr.mxu0 0.0
    %78 = vmatpush1.msra.mxu0 0.0
    %79 = vmatprep.subr.mxu0 0.0
    %80 = vmatpush1.msra.mxu0 0.0
    %81 = vmatprep.subr.mxu0 0.0
    %82 = vmatpush1.msra.mxu0 0.0
    %83 = vmatprep.subr.mxu0 0.0
    %84 = vmatpush1.msra.mxu0 0.0
    %85 = vmatprep.subr.mxu0 0.0
    %86 = vmatpush1.msra.mxu0 0.0
    %87 = vmatprep.subr.mxu0 0.0
    %88 = vmatpush1.msra.mxu0 0.0
    %89 = vmatprep.subr.mxu0 0.0
    %90 = vmatpush1.msra.mxu0 0.0
    %91 = vmatprep.subr.mxu0 0.0
    %92 = vmatpush1.msra.mxu0 0.0
    %93 = vmatprep.subr.mxu0 0.0
    %94 = vmatpush1.msra.mxu0 0.0
    %95 = vmatprep.subr.mxu0 0.0
    %96 = vmatpush1.msra.mxu0 0.0
    %97 = vmatprep.subr.mxu0 0.0
    %98 = vmatpush1.msra.mxu0 0.0
    %99 = vmatprep.subr.mxu0 0.0
    %100 = vmatpush1.msra.mxu0 0.0
    %101 = vmatprep.subr.mxu0 0.0
    %102 = vmatpush1.msra.mxu0 0.0
    %103 = vmatprep.subr.mxu0 0.0
    %104 = vmatpush1.msra.mxu0 0.0
    %105 = vmatprep.subr.mxu0 0.0
    %106 = vmatpush1.msra.mxu0 0.0
    %107 = vmatprep.subr.mxu0 0.0
    %108 = vmatpush1.msra.mxu0 0.0
    %109 = vmatprep.subr.mxu0 0.0
    %110 = vmatpush1.msra.mxu0 0.0
    %111 = vmatprep.subr.mxu0 0.0
    %112 = vmatpush1.msra.mxu0 0.0
    %113 = vmatprep.subr.mxu0 0.0
    %114 = vmatpush1.msra.mxu0 0.0
    %115 = vmatprep.subr.mxu0 0.0
    %116 = vmatpush1.msra.mxu0 0.0
    %117 = vmatprep.subr.mxu0 0.0
    %118 = vmatpush1.msra.mxu0 0.0
    %119 = vmatprep.subr.mxu0 0.0
    %120 = vmatpush1.msra.mxu0 0.0
    %121 = vmatprep.subr.mxu0 0.0
    %122 = vmatpush1.msra.mxu0 0.0
    %123 = vmatprep.subr.mxu0 0.0
    %124 = vmatpush1.msra.mxu0 0.0
    %125 = vmatprep.mubr.f32.mxu0 0.0
    %126 = vmatmul.mubr.f32.gmra.mrb[0].mxu0 %v38
    %v127 = vpop.f32.mrb[0].mxu0
    %v128 = vadd.f32 %v35, %v127
    %v129 = vpop.f32.mrb[0].mxu0
    %130 = vmatprep.mubr.f32.mxu0 0.0
    %131 = vmatmul.mubr.f32.gmra.mrb[0].mxu0 %v41
    %v132 = vpop.f32.mrb[0].mxu0
    %v133 = vadd.f32 %v35, %v132
    %v134 = vpop.f32.mrb[0].mxu0
    %135 = vmatprep.mubr.f32.mxu0 0.0
    %136 = vmatmul.mubr.f32.gmra.mrb[0].mxu0 %v44
    %v137 = vpop.f32.mrb[0].mxu0
    %v138 = vadd.f32 %v35, %v137
    %v139 = vpop.f32.mrb[0].mxu0
    %140 = vmatprep.mubr.f32.mxu0 0.0
    %141 = vmatmul.mubr.f32.gmra.mrb[0].mxu0 %v47
    %v142 = vpop.f32.mrb[0].mxu0
    %v143 = vadd.f32 %v35, %v142
    %v144 = vpop.f32.mrb[0].mxu0
    %145 = vmatprep.mubr.f32.mxu0 0.0
    %146 = vmatmul.mubr.f32.gmra.mrb[0].mxu0 %v50
    %v147 = vpop.f32.mrb[0].mxu0
    %v148 = vadd.f32 %v35, %v147
    %v149 = vpop.f32.mrb[0].mxu0
    %150 = vmatprep.mubr.f32.mxu0 0.0
    %151 = vmatmul.mubr.f32.gmra.mrb[0].mxu0 %v53
    %v152 = vpop.f32.mrb[0].mxu0
    %v153 = vadd.f32 %v35, %v152
    %v154 = vpop.f32.mrb[0].mxu0
    %155 = vmatprep.mubr.f32.mxu0 0.0
    %156 = vmatmul.mubr.f32.gmra.mrb[0].mxu0 %v56
    %v157 = vpop.f32.mrb[0].mxu0
    %v158 = vadd.f32 %v35, %v157
    %v159 = vpop.f32.mrb[0].mxu0
    %160 = vmatprep.mubr.f32.mxu0 0.0
    %161 = vmatmul.mubr.f32.gmra.mrb[0].mxu0 %v59
    %v162 = vpop.f32.mrb[0].mxu0
    %v163 = vadd.f32 %v35, %v162
    %v164 = vpop.f32.mrb[0].mxu0
    %165 = vdwg.mxu0
    %vm166 = vcmask 261120
    %v168 = vsel %vm166, %v22, 0
    %170 = vmatprep.subr.mxu0 0.0
    %171 = vmatpush1.msra.mxu0 %v15
    %172 = vmatprep.subr.mxu0 0.0
    %173 = vmatpush1.msra.mxu0 %v16
    %174 = vmatprep.subr.mxu0 0.0
    %175 = vmatpush1.msra.mxu0 %v17
    %176 = vmatprep.subr.mxu0 0.0
    %177 = vmatpush1.msra.mxu0 %v18
    %178 = vmatprep.subr.mxu0 0.0
    %179 = vmatpush1.msra.mxu0 0.0
    %180 = vmatprep.subr.mxu0 0.0
    %181 = vmatpush1.msra.mxu0 0.0
    %182 = vmatprep.subr.mxu0 0.0
    %183 = vmatpush1.msra.mxu0 0.0
    %184 = vmatprep.subr.mxu0 0.0
    %185 = vmatpush1.msra.mxu0 0.0
    %186 = vmatprep.subr.mxu0 0.0
    %187 = vmatpush1.msra.mxu0 0.0
    %188 = vmatprep.subr.mxu0 0.0
    %189 = vmatpush1.msra.mxu0 0.0
    %190 = vmatprep.subr.mxu0 0.0
    %191 = vmatpush1.msra.mxu0 0.0
    %192 = vmatprep.subr.mxu0 0.0
    %193 = vmatpush1.msra.mxu0 0.0
    %194 = vmatprep.subr.mxu0 0.0
    %195 = vmatpush1.msra.mxu0 0.0
    %196 = vmatprep.subr.mxu0 0.0
    %197 = vmatpush1.msra.mxu0 0.0
    %198 = vmatprep.subr.mxu0 0.0
    %199 = vmatpush1.msra.mxu0 0.0
    %200 = vmatprep.subr.mxu0 0.0
    %201 = vmatpush1.msra.mxu0 0.0
    %202 = vmatprep.subr.mxu0 0.0
    %203 = vmatpush1.msra.mxu0 0.0
    %204 = vmatprep.subr.mxu0 0.0
    %205 = vmatpush1.msra.mxu0 0.0
    %206 = vmatprep.subr.mxu0 0.0
    %207 = vmatpush1.msra.mxu0 0.0
    %208 = vmatprep.subr.mxu0 0.0
    %209 = vmatpush1.msra.mxu0 0.0
    %210 = vmatprep.subr.mxu0 0.0
    %211 = vmatpush1.msra.mxu0 0.0
    %212 = vmatprep.subr.mxu0 0.0
    %213 = vmatpush1.msra.mxu0 0.0
    %214 = vmatprep.subr.mxu0 0.0
    %215 = vmatpush1.msra.mxu0 0.0
    %216 = vmatprep.subr.mxu0 0.0
    %217 = vmatpush1.msra.mxu0 0.0
    %218 = vmatprep.subr.mxu0 0.0
    %219 = vmatpush1.msra.mxu0 0.0
    %220 = vmatprep.subr.mxu0 0.0
    %221 = vmatpush1.msra.mxu0 0.0
    %222 = vmatprep.subr.mxu0 0.0
    %223 = vmatpush1.msra.mxu0 0.0
    %224 = vmatprep.subr.mxu0 0.0
    %225 = vmatpush1.msra.mxu0 0.0
    %226 = vmatprep.subr.mxu0 0.0
    %227 = vmatpush1.msra.mxu0 0.0
    %228 = vmatprep.subr.mxu0 0.0
    %229 = vmatpush1.msra.mxu0 0.0
    %230 = vmatprep.subr.mxu0 0.0
    %231 = vmatpush1.msra.mxu0 0.0
    %232 = vmatprep.subr.mxu0 0.0
    %233 = vmatpush1.msra.mxu0 0.0
    %234 = vmatprep.mubr.f32.mxu0 0.0
    %235 = vmatmul.mubr.f32.gmra.mrb[0].mxu0 %v168
    %v236 = vpop.f32.mrb[0].mxu0
    %v237 = vadd.f32 0.0, %v236
    %v238 = vpop.f32.mrb[0].mxu0
    %239 = vdwg.mxu0
    %v240 = vadd.f32 %v128, %v237
    %v241 = vmul.f32 %v240, 0.2
    %v242 = vadd.f32 %v241, 0.5
    %v243 = vmax.f32 %v242, 0.0
    %v244 = vmin.f32 %v243, 1.0
    %v245 = vtanh.pop %v240
    %247 = vrot.lane.b32.xlu0 %v23, 32
    %v248 = vpop.permute.xlu0 %247
    %v250 = vmul.f32 %v244, %v248
    %252 = vrot.lane.b32.xlu0 %v245, 64
    %v253 = vpop.permute.xlu0 %252
    %v255 = vmul.f32 %v244, %v253
    %257 = vrot.lane.b32.xlu0 %v255, 32
    %v258 = vpop.permute.xlu0 %257
    %v260 = vadd.f32 %v250, %v258
    %v261 = vtanh.pop %v260
    %263 = vrot.lane.b32.xlu0 %v261, 64
    %v264 = vpop.permute.xlu0 %263
    %v266 = vmul.f32 %v244, %v264
    %268 = vrot.lane.b32.xlu0 %v266, 32
    %v269 = vpop.permute.xlu0 %268
    %v270 = vsel %vm166, %v269, 0
    %272 = vmatprep.subr.mxu0 0.0
    %273 = vmatpush1.msra.mxu0 %v15
    %274 = vmatprep.subr.mxu0 0.0
    %275 = vmatpush1.msra.mxu0 %v16
    %276 = vmatprep.subr.mxu0 0.0
    %277 = vmatpush1.msra.mxu0 %v17
    %278 = vmatprep.subr.mxu0 0.0
    %279 = vmatpush1.msra.mxu0 %v18
    %280 = vmatprep.subr.mxu0 0.0
    %281 = vmatpush1.msra.mxu0 0.0
    %282 = vmatprep.subr.mxu0 0.0
    %283 = vmatpush1.msra.mxu0 0.0
    %284 = vmatprep.subr.mxu0 0.0
    %285 = vmatpush1.msra.mxu0 0.0
    %286 = vmatprep.subr.mxu0 0.0
    %287 = vmatpush1.msra.mxu0 0.0
    %288 = vmatprep.subr.mxu0 0.0
    %289 = vmatpush1.msra.mxu0 0.0
    %290 = vmatprep.subr.mxu0 0.0
    %291 = vmatpush1.msra.mxu0 0.0
    %292 = vmatprep.subr.mxu0 0.0
    %293 = vmatpush1.msra.mxu0 0.0
    %294 = vmatprep.subr.mxu0 0.0
    %295 = vmatpush1.msra.mxu0 0.0
    %296 = vmatprep.subr.mxu0 0.0
    %297 = vmatpush1.msra.mxu0 0.0
    %298 = vmatprep.subr.mxu0 0.0
    %299 = vmatpush1.msra.mxu0 0.0
    %300 = vmatprep.subr.mxu0 0.0
    %301 = vmatpush1.msra.mxu0 0.0
    %302 = vmatprep.subr.mxu0 0.0
    %303 = vmatpush1.msra.mxu0 0.0
    %304 = vmatprep.subr.mxu0 0.0
    %305 = vmatpush1.msra.mxu0 0.0
    %306 = vmatprep.subr.mxu0 0.0
    %307 = vmatpush1.msra.mxu0 0.0
    %308 = vmatprep.subr.mxu0 0.0
    %309 = vmatpush1.msra.mxu0 0.0
    %310 = vmatprep.subr.mxu0 0.0
    %311 = vmatpush1.msra.mxu0 0.0
    %312 = vmatprep.subr.mxu0 0.0
    %313 = vmatpush1.msra.mxu0 0.0
    %314 = vmatprep.subr.mxu0 0.0
    %315 = vmatpush1.msra.mxu0 0.0
    %316 = vmatprep.subr.mxu0 0.0
    %317 = vmatpush1.msra.mxu0 0.0
    %318 = vmatprep.subr.mxu0 0.0
    %319 = vmatpush1.msra.mxu0 0.0
    %320 = vmatprep.subr.mxu0 0.0
    %321 = vmatpush1.msra.mxu0 0.0
    %322 = vmatprep.subr.mxu0 0.0
    %323 = vmatpush1.msra.mxu0 0.0
    %324 = vmatprep.subr.mxu0 0.0
    %325 = vmatpush1.msra.mxu0 0.0
    %326 = vmatprep.subr.mxu0 0.0
    %327 = vmatpush1.msra.mxu0 0.0
    %328 = vmatprep.subr.mxu0 0.0
    %329 = vmatpush1.msra.mxu0 0.0
    %330 = vmatprep.subr.mxu0 0.0
    %331 = vmatpush1.msra.mxu0 0.0
    %332 = vmatprep.subr.mxu0 0.0
    %333 = vmatpush1.msra.mxu0 0.0
    %334 = vmatprep.subr.mxu0 0.0
    %335 = vmatpush1.msra.mxu0 0.0
    %336 = vmatprep.mubr.f32.mxu0 0.0
    %337 = vmatmul.mubr.f32.gmra.mrb[0].mxu0 %v270
    %v338 = vpop.f32.mrb[0].mxu0
    %v339 = vadd.f32 0.0, %v338
    %v340 = vpop.f32.mrb[0].mxu0
    %341 = vdwg.mxu0
    %v342 = vadd.f32 %v133, %v339
    %v343 = vmul.f32 %v342, 0.2
    %v344 = vadd.f32 %v343, 0.5
    %v345 = vmax.f32 %v344, 0.0
    %v346 = vmin.f32 %v345, 1.0
    %v347 = vtanh.pop %v342
    %v348 = vmul.f32 %v346, %v260
    %350 = vrot.lane.b32.xlu0 %v347, 64
    %v351 = vpop.permute.xlu0 %350
    %v353 = vmul.f32 %v346, %v351
    %355 = vrot.lane.b32.xlu0 %v353, 32
    %v356 = vpop.permute.xlu0 %355
    %v358 = vadd.f32 %v348, %v356
    %v359 = vtanh.pop %v358
    %361 = vrot.lane.b32.xlu0 %v359, 64
    %v362 = vpop.permute.xlu0 %361
    %v364 = vmul.f32 %v346, %v362
    %366 = vrot.lane.b32.xlu0 %v364, 32
    %v367 = vpop.permute.xlu0 %366
    %v368 = vsel %vm166, %v367, 0
    %370 = vmatprep.subr.mxu0 0.0
    %371 = vmatpush1.msra.mxu0 %v15
    %372 = vmatprep.subr.mxu0 0.0
    %373 = vmatpush1.msra.mxu0 %v16
    %374 = vmatprep.subr.mxu0 0.0
    %375 = vmatpush1.msra.mxu0 %v17
    %376 = vmatprep.subr.mxu0 0.0
    %377 = vmatpush1.msra.mxu0 %v18
    %378 = vmatprep.subr.mxu0 0.0
    %379 = vmatpush1.msra.mxu0 0.0
    %380 = vmatprep.subr.mxu0 0.0
    %381 = vmatpush1.msra.mxu0 0.0
    %382 = vmatprep.subr.mxu0 0.0
    %383 = vmatpush1.msra.mxu0 0.0
    %384 = vmatprep.subr.mxu0 0.0
    %385 = vmatpush1.msra.mxu0 0.0
    %386 = vmatprep.subr.mxu0 0.0
    %387 = vmatpush1.msra.mxu0 0.0
    %388 = vmatprep.subr.mxu0 0.0
    %389 = vmatpush1.msra.mxu0 0.0
    %390 = vmatprep.subr.mxu0 0.0
    %391 = vmatpush1.msra.mxu0 0.0
    %392 = vmatprep.subr.mxu0 0.0
    %393 = vmatpush1.msra.mxu0 0.0
    %394 = vmatprep.subr.mxu0 0.0
    %395 = vmatpush1.msra.mxu0 0.0
    %396 = vmatprep.subr.mxu0 0.0
    %397 = vmatpush1.msra.mxu0 0.0
    %398 = vmatprep.subr.mxu0 0.0
    %399 = vmatpush1.msra.mxu0 0.0
    %400 = vmatprep.subr.mxu0 0.0
    %401 = vmatpush1.msra.mxu0 0.0
    %402 = vmatprep.subr.mxu0 0.0
    %403 = vmatpush1.msra.mxu0 0.0
    %404 = vmatprep.subr.mxu0 0.0
    %405 = vmatpush1.msra.mxu0 0.0
    %406 = vmatprep.subr.mxu0 0.0
    %407 = vmatpush1.msra.mxu0 0.0
    %408 = vmatprep.subr.mxu0 0.0
    %409 = vmatpush1.msra.mxu0 0.0
    %410 = vmatprep.subr.mxu0 0.0
    %411 = vmatpush1.msra.mxu0 0.0
    %412 = vmatprep.subr.mxu0 0.0
    %413 = vmatpush1.msra.mxu0 0.0
    %414 = vmatprep.subr.mxu0 0.0
    %415 = vmatpush1.msra.mxu0 0.0
    %416 = vmatprep.subr.mxu0 0.0
    %417 = vmatpush1.msra.mxu0 0.0
    %418 = vmatprep.subr.mxu0 0.0
    %419 = vmatpush1.msra.mxu0 0.0
    %420 = vmatprep.subr.mxu0 0.0
    %421 = vmatpush1.msra.mxu0 0.0
    %422 = vmatprep.subr.mxu0 0.0
    %423 = vmatpush1.msra.mxu0 0.0
    %424 = vmatprep.subr.mxu0 0.0
    %425 = vmatpush1.msra.mxu0 0.0
    %426 = vmatprep.subr.mxu0 0.0
    %427 = vmatpush1.msra.mxu0 0.0
    %428 = vmatprep.subr.mxu0 0.0
    %429 = vmatpush1.msra.mxu0 0.0
    %430 = vmatprep.subr.mxu0 0.0
    %431 = vmatpush1.msra.mxu0 0.0
    %432 = vmatprep.subr.mxu0 0.0
    %433 = vmatpush1.msra.mxu0 0.0
    %434 = vmatprep.mubr.f32.mxu0 0.0
    %435 = vmatmul.mubr.f32.gmra.mrb[0].mxu0 %v368
    %v436 = vpop.f32.mrb[0].mxu0
    %v437 = vadd.f32 0.0, %v436
    %v438 = vpop.f32.mrb[0].mxu0
    %439 = vdwg.mxu0
    %v440 = vadd.f32 %v138, %v437
    %v441 = vmul.f32 %v440, 0.2
    %v442 = vadd.f32 %v441, 0.5
    %v443 = vmax.f32 %v442, 0.0
    %v444 = vmin.f32 %v443, 1.0
    %v445 = vtanh.pop %v440
    %v446 = vmul.f32 %v444, %v358
    %448 = vrot.lane.b32.xlu0 %v445, 64
    %v449 = vpop.permute.xlu0 %448
    %v451 = vmul.f32 %v444, %v449
    %453 = vrot.lane.b32.xlu0 %v451, 32
    %v454 = vpop.permute.xlu0 %453
    %v456 = vadd.f32 %v446, %v454
    %v457 = vtanh.pop %v456
    %459 = vrot.lane.b32.xlu0 %v457, 64
    %v460 = vpop.permute.xlu0 %459
    %v462 = vmul.f32 %v444, %v460
    %464 = vrot.lane.b32.xlu0 %v462, 32
    %v465 = vpop.permute.xlu0 %464
    %v466 = vsel %vm166, %v465, 0
    %468 = vmatprep.subr.mxu0 0.0
    %469 = vmatpush1.msra.mxu0 %v15
    %470 = vmatprep.subr.mxu0 0.0
    %471 = vmatpush1.msra.mxu0 %v16
    %472 = vmatprep.subr.mxu0 0.0
    %473 = vmatpush1.msra.mxu0 %v17
    %474 = vmatprep.subr.mxu0 0.0
    %475 = vmatpush1.msra.mxu0 %v18
    %476 = vmatprep.subr.mxu0 0.0
    %477 = vmatpush1.msra.mxu0 0.0
    %478 = vmatprep.subr.mxu0 0.0
    %479 = vmatpush1.msra.mxu0 0.0
    %480 = vmatprep.subr.mxu0 0.0
    %481 = vmatpush1.msra.mxu0 0.0
    %482 = vmatprep.subr.mxu0 0.0
    %483 = vmatpush1.msra.mxu0 0.0
    %484 = vmatprep.subr.mxu0 0.0
    %485 = vmatpush1.msra.mxu0 0.0
    %486 = vmatprep.subr.mxu0 0.0
    %487 = vmatpush1.msra.mxu0 0.0
    %488 = vmatprep.subr.mxu0 0.0
    %489 = vmatpush1.msra.mxu0 0.0
    %490 = vmatprep.subr.mxu0 0.0
    %491 = vmatpush1.msra.mxu0 0.0
    %492 = vmatprep.subr.mxu0 0.0
    %493 = vmatpush1.msra.mxu0 0.0
    %494 = vmatprep.subr.mxu0 0.0
    %495 = vmatpush1.msra.mxu0 0.0
    %496 = vmatprep.subr.mxu0 0.0
    %497 = vmatpush1.msra.mxu0 0.0
    %498 = vmatprep.subr.mxu0 0.0
    %499 = vmatpush1.msra.mxu0 0.0
    %500 = vmatprep.subr.mxu0 0.0
    %501 = vmatpush1.msra.mxu0 0.0
    %502 = vmatprep.subr.mxu0 0.0
    %503 = vmatpush1.msra.mxu0 0.0
    %504 = vmatprep.subr.mxu0 0.0
    %505 = vmatpush1.msra.mxu0 0.0
    %506 = vmatprep.subr.mxu0 0.0
    %507 = vmatpush1.msra.mxu0 0.0
    %508 = vmatprep.subr.mxu0 0.0
    %509 = vmatpush1.msra.mxu0 0.0
    %510 = vmatprep.subr.mxu0 0.0
    %511 = vmatpush1.msra.mxu0 0.0
    %512 = vmatprep.subr.mxu0 0.0
    %513 = vmatpush1.msra.mxu0 0.0
    %514 = vmatprep.subr.mxu0 0.0
    %515 = vmatpush1.msra.mxu0 0.0
    %516 = vmatprep.subr.mxu0 0.0
    %517 = vmatpush1.msra.mxu0 0.0
    %518 = vmatprep.subr.mxu0 0.0
    %519 = vmatpush1.msra.mxu0 0.0
    %520 = vmatprep.subr.mxu0 0.0
    %521 = vmatpush1.msra.mxu0 0.0
    %522 = vmatprep.subr.mxu0 0.0
    %523 = vmatpush1.msra.mxu0 0.0
    %524 = vmatprep.subr.mxu0 0.0
    %525 = vmatpush1.msra.mxu0 0.0
    %526 = vmatprep.subr.mxu0 0.0
    %527 = vmatpush1.msra.mxu0 0.0
    %528 = vmatprep.subr.mxu0 0.0
    %529 = vmatpush1.msra.mxu0 0.0
    %530 = vmatprep.subr.mxu0 0.0
    %531 = vmatpush1.msra.mxu0 0.0
    %532 = vmatprep.mubr.f32.mxu0 0.0
    %533 = vmatmul.mubr.f32.gmra.mrb[0].mxu0 %v466
    %v534 = vpop.f32.mrb[0].mxu0
    %v535 = vadd.f32 0.0, %v534
    %v536 = vpop.f32.mrb[0].mxu0
    %537 = vdwg.mxu0
    %v538 = vadd.f32 %v143, %v535
    %v539 = vmul.f32 %v538, 0.2
    %v540 = vadd.f32 %v539, 0.5
    %v541 = vmax.f32 %v540, 0.0
    %v542 = vmin.f32 %v541, 1.0
    %v543 = vtanh.pop %v538
    %v544 = vmul.f32 %v542, %v456
    %546 = vrot.lane.b32.xlu0 %v543, 64
    %v547 = vpop.permute.xlu0 %546
    %v549 = vmul.f32 %v542, %v547
    %551 = vrot.lane.b32.xlu0 %v549, 32
    %v552 = vpop.permute.xlu0 %551
    %v554 = vadd.f32 %v544, %v552
    %v555 = vtanh.pop %v554
    %557 = vrot.lane.b32.xlu0 %v555, 64
    %v558 = vpop.permute.xlu0 %557
    %v560 = vmul.f32 %v542, %v558
    %562 = vrot.lane.b32.xlu0 %v560, 32
    %v563 = vpop.permute.xlu0 %562
    %v564 = vsel %vm166, %v563, 0
    %566 = vmatprep.subr.mxu0 0.0
    %567 = vmatpush1.msra.mxu0 %v15
    %568 = vmatprep.subr.mxu0 0.0
    %569 = vmatpush1.msra.mxu0 %v16
    %570 = vmatprep.subr.mxu0 0.0
    %571 = vmatpush1.msra.mxu0 %v17
    %572 = vmatprep.subr.mxu0 0.0
    %573 = vmatpush1.msra.mxu0 %v18
    %574 = vmatprep.subr.mxu0 0.0
    %575 = vmatpush1.msra.mxu0 0.0
    %576 = vmatprep.subr.mxu0 0.0
    %577 = vmatpush1.msra.mxu0 0.0
    %578 = vmatprep.subr.mxu0 0.0
    %579 = vmatpush1.msra.mxu0 0.0
    %580 = vmatprep.subr.mxu0 0.0
    %581 = vmatpush1.msra.mxu0 0.0
    %582 = vmatprep.subr.mxu0 0.0
    %583 = vmatpush1.msra.mxu0 0.0
    %584 = vmatprep.subr.mxu0 0.0
    %585 = vmatpush1.msra.mxu0 0.0
    %586 = vmatprep.subr.mxu0 0.0
    %587 = vmatpush1.msra.mxu0 0.0
    %588 = vmatprep.subr.mxu0 0.0
    %589 = vmatpush1.msra.mxu0 0.0
    %590 = vmatprep.subr.mxu0 0.0
    %591 = vmatpush1.msra.mxu0 0.0
    %592 = vmatprep.subr.mxu0 0.0
    %593 = vmatpush1.msra.mxu0 0.0
    %594 = vmatprep.subr.mxu0 0.0
    %595 = vmatpush1.msra.mxu0 0.0
    %596 = vmatprep.subr.mxu0 0.0
    %597 = vmatpush1.msra.mxu0 0.0
    %598 = vmatprep.subr.mxu0 0.0
    %599 = vmatpush1.msra.mxu0 0.0
    %600 = vmatprep.subr.mxu0 0.0
    %601 = vmatpush1.msra.mxu0 0.0
    %602 = vmatprep.subr.mxu0 0.0
    %603 = vmatpush1.msra.mxu0 0.0
    %604 = vmatprep.subr.mxu0 0.0
    %605 = vmatpush1.msra.mxu0 0.0
    %606 = vmatprep.subr.mxu0 0.0
    %607 = vmatpush1.msra.mxu0 0.0
    %608 = vmatprep.subr.mxu0 0.0
    %609 = vmatpush1.msra.mxu0 0.0
    %610 = vmatprep.subr.mxu0 0.0
    %611 = vmatpush1.msra.mxu0 0.0
    %612 = vmatprep.subr.mxu0 0.0
    %613 = vmatpush1.msra.mxu0 0.0
    %614 = vmatprep.subr.mxu0 0.0
    %615 = vmatpush1.msra.mxu0 0.0
    %616 = vmatprep.subr.mxu0 0.0
    %617 = vmatpush1.msra.mxu0 0.0
    %618 = vmatprep.subr.mxu0 0.0
    %619 = vmatpush1.msra.mxu0 0.0
    %620 = vmatprep.subr.mxu0 0.0
    %621 = vmatpush1.msra.mxu0 0.0
    %622 = vmatprep.subr.mxu0 0.0
    %623 = vmatpush1.msra.mxu0 0.0
    %624 = vmatprep.subr.mxu0 0.0
    %625 = vmatpush1.msra.mxu0 0.0
    %626 = vmatprep.subr.mxu0 0.0
    %627 = vmatpush1.msra.mxu0 0.0
    %628 = vmatprep.subr.mxu0 0.0
    %629 = vmatpush1.msra.mxu0 0.0
    %630 = vmatprep.mubr.f32.mxu0 0.0
    %631 = vmatmul.mubr.f32.gmra.mrb[0].mxu0 %v564
    %v632 = vpop.f32.mrb[0].mxu0
    %v633 = vadd.f32 0.0, %v632
    %v634 = vpop.f32.mrb[0].mxu0
    %635 = vdwg.mxu0
    %v636 = vadd.f32 %v148, %v633
    %v637 = vmul.f32 %v636, 0.2
    %v638 = vadd.f32 %v637, 0.5
    %v639 = vmax.f32 %v638, 0.0
    %v640 = vmin.f32 %v639, 1.0
    %v641 = vtanh.pop %v636
    %v642 = vmul.f32 %v640, %v554
    %644 = vrot.lane.b32.xlu0 %v641, 64
    %v645 = vpop.permute.xlu0 %644
    %v647 = vmul.f32 %v640, %v645
    %649 = vrot.lane.b32.xlu0 %v647, 32
    %v650 = vpop.permute.xlu0 %649
    %v652 = vadd.f32 %v642, %v650
    %v653 = vtanh.pop %v652
    %655 = vrot.lane.b32.xlu0 %v653, 64
    %v656 = vpop.permute.xlu0 %655
    %v658 = vmul.f32 %v640, %v656
    %660 = vrot.lane.b32.xlu0 %v658, 32
    %v661 = vpop.permute.xlu0 %660
    %v662 = vsel %vm166, %v661, 0
    %664 = vmatprep.subr.mxu0 0.0
    %665 = vmatpush1.msra.mxu0 %v15
    %666 = vmatprep.subr.mxu0 0.0
    %667 = vmatpush1.msra.mxu0 %v16
    %668 = vmatprep.subr.mxu0 0.0
    %669 = vmatpush1.msra.mxu0 %v17
    %670 = vmatprep.subr.mxu0 0.0
    %671 = vmatpush1.msra.mxu0 %v18
    %672 = vmatprep.subr.mxu0 0.0
    %673 = vmatpush1.msra.mxu0 0.0
    %674 = vmatprep.subr.mxu0 0.0
    %675 = vmatpush1.msra.mxu0 0.0
    %676 = vmatprep.subr.mxu0 0.0
    %677 = vmatpush1.msra.mxu0 0.0
    %678 = vmatprep.subr.mxu0 0.0
    %679 = vmatpush1.msra.mxu0 0.0
    %680 = vmatprep.subr.mxu0 0.0
    %681 = vmatpush1.msra.mxu0 0.0
    %682 = vmatprep.subr.mxu0 0.0
    %683 = vmatpush1.msra.mxu0 0.0
    %684 = vmatprep.subr.mxu0 0.0
    %685 = vmatpush1.msra.mxu0 0.0
    %686 = vmatprep.subr.mxu0 0.0
    %687 = vmatpush1.msra.mxu0 0.0
    %688 = vmatprep.subr.mxu0 0.0
    %689 = vmatpush1.msra.mxu0 0.0
    %690 = vmatprep.subr.mxu0 0.0
    %691 = vmatpush1.msra.mxu0 0.0
    %692 = vmatprep.subr.mxu0 0.0
    %693 = vmatpush1.msra.mxu0 0.0
    %694 = vmatprep.subr.mxu0 0.0
    %695 = vmatpush1.msra.mxu0 0.0
    %696 = vmatprep.subr.mxu0 0.0
    %697 = vmatpush1.msra.mxu0 0.0
    %698 = vmatprep.subr.mxu0 0.0
    %699 = vmatpush1.msra.mxu0 0.0
    %700 = vmatprep.subr.mxu0 0.0
    %701 = vmatpush1.msra.mxu0 0.0
    %702 = vmatprep.subr.mxu0 0.0
    %703 = vmatpush1.msra.mxu0 0.0
    %704 = vmatprep.subr.mxu0 0.0
    %705 = vmatpush1.msra.mxu0 0.0
    %706 = vmatprep.subr.mxu0 0.0
    %707 = vmatpush1.msra.mxu0 0.0
    %708 = vmatprep.subr.mxu0 0.0
    %709 = vmatpush1.msra.mxu0 0.0
    %710 = vmatprep.subr.mxu0 0.0
    %711 = vmatpush1.msra.mxu0 0.0
    %712 = vmatprep.subr.mxu0 0.0
    %713 = vmatpush1.msra.mxu0 0.0
    %714 = vmatprep.subr.mxu0 0.0
    %715 = vmatpush1.msra.mxu0 0.0
    %716 = vmatprep.subr.mxu0 0.0
    %717 = vmatpush1.msra.mxu0 0.0
    %718 = vmatprep.subr.mxu0 0.0
    %719 = vmatpush1.msra.mxu0 0.0
    %720 = vmatprep.subr.mxu0 0.0
    %721 = vmatpush1.msra.mxu0 0.0
    %722 = vmatprep.subr.mxu0 0.0
    %723 = vmatpush1.msra.mxu0 0.0
    %724 = vmatprep.subr.mxu0 0.0
    %725 = vmatpush1.msra.mxu0 0.0
    %726 = vmatprep.subr.mxu0 0.0
    %727 = vmatpush1.msra.mxu0 0.0
    %728 = vmatprep.mubr.f32.mxu0 0.0
    %729 = vmatmul.mubr.f32.gmra.mrb[0].mxu0 %v662
    %v730 = vpop.f32.mrb[0].mxu0
    %v731 = vadd.f32 0.0, %v730
    %v732 = vpop.f32.mrb[0].mxu0
    %733 = vdwg.mxu0
    %v734 = vadd.f32 %v153, %v731
    %v735 = vmul.f32 %v734, 0.2
    %v736 = vadd.f32 %v735, 0.5
    %v737 = vmax.f32 %v736, 0.0
    %v738 = vmin.f32 %v737, 1.0
    %v739 = vtanh.pop %v734
    %v740 = vmul.f32 %v738, %v652
    %742 = vrot.lane.b32.xlu0 %v739, 64
    %v743 = vpop.permute.xlu0 %742
    %v745 = vmul.f32 %v738, %v743
    %747 = vrot.lane.b32.xlu0 %v745, 32
    %v748 = vpop.permute.xlu0 %747
    %v750 = vadd.f32 %v740, %v748
    %v751 = vtanh.pop %v750
    %753 = vrot.lane.b32.xlu0 %v751, 64
    %v754 = vpop.permute.xlu0 %753
    %v756 = vmul.f32 %v738, %v754
    %758 = vrot.lane.b32.xlu0 %v756, 32
    %v759 = vpop.permute.xlu0 %758
    %v760 = vsel %vm166, %v759, 0
    %762 = vmatprep.subr.mxu0 0.0
    %763 = vmatpush1.msra.mxu0 %v15
    %764 = vmatprep.subr.mxu0 0.0
    %765 = vmatpush1.msra.mxu0 %v16
    %766 = vmatprep.subr.mxu0 0.0
    %767 = vmatpush1.msra.mxu0 %v17
    %768 = vmatprep.subr.mxu0 0.0
    %769 = vmatpush1.msra.mxu0 %v18
    %770 = vmatprep.subr.mxu0 0.0
    %771 = vmatpush1.msra.mxu0 0.0
    %772 = vmatprep.subr.mxu0 0.0
    %773 = vmatpush1.msra.mxu0 0.0
    %774 = vmatprep.subr.mxu0 0.0
    %775 = vmatpush1.msra.mxu0 0.0
    %776 = vmatprep.subr.mxu0 0.0
    %777 = vmatpush1.msra.mxu0 0.0
    %778 = vmatprep.subr.mxu0 0.0
    %779 = vmatpush1.msra.mxu0 0.0
    %780 = vmatprep.subr.mxu0 0.0
    %781 = vmatpush1.msra.mxu0 0.0
    %782 = vmatprep.subr.mxu0 0.0
    %783 = vmatpush1.msra.mxu0 0.0
    %784 = vmatprep.subr.mxu0 0.0
    %785 = vmatpush1.msra.mxu0 0.0
    %786 = vmatprep.subr.mxu0 0.0
    %787 = vmatpush1.msra.mxu0 0.0
    %788 = vmatprep.subr.mxu0 0.0
    %789 = vmatpush1.msra.mxu0 0.0
    %790 = vmatprep.subr.mxu0 0.0
    %791 = vmatpush1.msra.mxu0 0.0
    %792 = vmatprep.subr.mxu0 0.0
    %793 = vmatpush1.msra.mxu0 0.0
    %794 = vmatprep.subr.mxu0 0.0
    %795 = vmatpush1.msra.mxu0 0.0
    %796 = vmatprep.subr.mxu0 0.0
    %797 = vmatpush1.msra.mxu0 0.0
    %798 = vmatprep.subr.mxu0 0.0
    %799 = vmatpush1.msra.mxu0 0.0
    %800 = vmatprep.subr.mxu0 0.0
    %801 = vmatpush1.msra.mxu0 0.0
    %802 = vmatprep.subr.mxu0 0.0
    %803 = vmatpush1.msra.mxu0 0.0
    %804 = vmatprep.subr.mxu0 0.0
    %805 = vmatpush1.msra.mxu0 0.0
    %806 = vmatprep.subr.mxu0 0.0
    %807 = vmatpush1.msra.mxu0 0.0
    %808 = vmatprep.subr.mxu0 0.0
    %809 = vmatpush1.msra.mxu0 0.0
    %810 = vmatprep.subr.mxu0 0.0
    %811 = vmatpush1.msra.mxu0 0.0
    %812 = vmatprep.subr.mxu0 0.0
    %813 = vmatpush1.msra.mxu0 0.0
    %814 = vmatprep.subr.mxu0 0.0
    %815 = vmatpush1.msra.mxu0 0.0
    %816 = vmatprep.subr.mxu0 0.0
    %817 = vmatpush1.msra.mxu0 0.0
    %818 = vmatprep.subr.mxu0 0.0
    %819 = vmatpush1.msra.mxu0 0.0
    %820 = vmatprep.subr.mxu0 0.0
    %821 = vmatpush1.msra.mxu0 0.0
    %822 = vmatprep.subr.mxu0 0.0
    %823 = vmatpush1.msra.mxu0 0.0
    %824 = vmatprep.subr.mxu0 0.0
    %825 = vmatpush1.msra.mxu0 0.0
    %826 = vmatprep.mubr.f32.mxu0 0.0
    %827 = vmatmul.mubr.f32.gmra.mrb[0].mxu0 %v760
    %v828 = vpop.f32.mrb[0].mxu0
    %v829 = vadd.f32 0.0, %v828
    %v830 = vpop.f32.mrb[0].mxu0
    %831 = vdwg.mxu0
    %v832 = vadd.f32 %v158, %v829
    %v833 = vmul.f32 %v832, 0.2
    %v834 = vadd.f32 %v833, 0.5
    %v835 = vmax.f32 %v834, 0.0
    %v836 = vmin.f32 %v835, 1.0
    %v837 = vtanh.pop %v832
    %v838 = vmul.f32 %v836, %v750
    %840 = vrot.lane.b32.xlu0 %v837, 64
    %v841 = vpop.permute.xlu0 %840
    %v843 = vmul.f32 %v836, %v841
    %845 = vrot.lane.b32.xlu0 %v843, 32
    %v846 = vpop.permute.xlu0 %845
    %v848 = vadd.f32 %v838, %v846
    %v849 = vtanh.pop %v848
    %851 = vrot.lane.b32.xlu0 %v849, 64
    %v852 = vpop.permute.xlu0 %851
    %v854 = vmul.f32 %v836, %v852
    %856 = vrot.lane.b32.xlu0 %v854, 32
    %v857 = vpop.permute.xlu0 %856
    %v858 = vsel %vm166, %v857, 0
    %860 = vmatprep.subr.mxu0 0.0
    %861 = vmatpush1.msra.mxu0 %v15
    %862 = vmatprep.subr.mxu0 0.0
    %863 = vmatpush1.msra.mxu0 %v16
    %864 = vmatprep.subr.mxu0 0.0
    %865 = vmatpush1.msra.mxu0 %v17
    %866 = vmatprep.subr.mxu0 0.0
    %867 = vmatpush1.msra.mxu0 %v18
    %868 = vmatprep.subr.mxu0 0.0
    %869 = vmatpush1.msra.mxu0 0.0
    %870 = vmatprep.subr.mxu0 0.0
    %871 = vmatpush1.msra.mxu0 0.0
    %872 = vmatprep.subr.mxu0 0.0
    %873 = vmatpush1.msra.mxu0 0.0
    %874 = vmatprep.subr.mxu0 0.0
    %875 = vmatpush1.msra.mxu0 0.0
    %876 = vmatprep.subr.mxu0 0.0
    %877 = vmatpush1.msra.mxu0 0.0
    %878 = vmatprep.subr.mxu0 0.0
    %879 = vmatpush1.msra.mxu0 0.0
    %880 = vmatprep.subr.mxu0 0.0
    %881 = vmatpush1.msra.mxu0 0.0
    %882 = vmatprep.subr.mxu0 0.0
    %883 = vmatpush1.msra.mxu0 0.0
    %884 = vmatprep.subr.mxu0 0.0
    %885 = vmatpush1.msra.mxu0 0.0
    %886 = vmatprep.subr.mxu0 0.0
    %887 = vmatpush1.msra.mxu0 0.0
    %888 = vmatprep.subr.mxu0 0.0
    %889 = vmatpush1.msra.mxu0 0.0
    %890 = vmatprep.subr.mxu0 0.0
    %891 = vmatpush1.msra.mxu0 0.0
    %892 = vmatprep.subr.mxu0 0.0
    %893 = vmatpush1.msra.mxu0 0.0
    %894 = vmatprep.subr.mxu0 0.0
    %895 = vmatpush1.msra.mxu0 0.0
    %896 = vmatprep.subr.mxu0 0.0
    %897 = vmatpush1.msra.mxu0 0.0
    %898 = vmatprep.subr.mxu0 0.0
    %899 = vmatpush1.msra.mxu0 0.0
    %900 = vmatprep.subr.mxu0 0.0
    %901 = vmatpush1.msra.mxu0 0.0
    %902 = vmatprep.subr.mxu0 0.0
    %903 = vmatpush1.msra.mxu0 0.0
    %904 = vmatprep.subr.mxu0 0.0
    %905 = vmatpush1.msra.mxu0 0.0
    %906 = vmatprep.subr.mxu0 0.0
    %907 = vmatpush1.msra.mxu0 0.0
    %908 = vmatprep.subr.mxu0 0.0
    %909 = vmatpush1.msra.mxu0 0.0
    %910 = vmatprep.subr.mxu0 0.0
    %911 = vmatpush1.msra.mxu0 0.0
    %912 = vmatprep.subr.mxu0 0.0
    %913 = vmatpush1.msra.mxu0 0.0
    %914 = vmatprep.subr.mxu0 0.0
    %915 = vmatpush1.msra.mxu0 0.0
    %916 = vmatprep.subr.mxu0 0.0
    %917 = vmatpush1.msra.mxu0 0.0
    %918 = vmatprep.subr.mxu0 0.0
    %919 = vmatpush1.msra.mxu0 0.0
    %920 = vmatprep.subr.mxu0 0.0
    %921 = vmatpush1.msra.mxu0 0.0
    %922 = vmatprep.subr.mxu0 0.0
    %923 = vmatpush1.msra.mxu0 0.0
    %924 = vmatprep.mubr.f32.mxu0 0.0
    %925 = vmatmul.mubr.f32.gmra.mrb[0].mxu0 %v858
    %v926 = vpop.f32.mrb[0].mxu0
    %v927 = vadd.f32 0.0, %v926
    %v928 = vpop.f32.mrb[0].mxu0
    %929 = vdwg.mxu0
    %v930 = vadd.f32 %v163, %v927
    %v931 = vmul.f32 %v930, 0.2
    %v932 = vadd.f32 %v931, 0.5
    %v933 = vmax.f32 %v932, 0.0
    %v934 = vmin.f32 %v933, 1.0
    %v935 = vtanh.pop %v930
    %v936 = vmul.f32 %v934, %v848
    %938 = vrot.lane.b32.xlu0 %v935, 64
    %v939 = vpop.permute.xlu0 %938
    %v941 = vmul.f32 %v934, %v939
    %943 = vrot.lane.b32.xlu0 %v941, 32
    %v944 = vpop.permute.xlu0 %943
    %v946 = vadd.f32 %v936, %v944
    %v947 = vtanh.pop %v946
    %949 = vrot.lane.b32.xlu0 %v947, 64
    %v950 = vpop.permute.xlu0 %949
    %v952 = vmul.f32 %v934, %v950
    %954 = vrot.lane.b32.xlu0 %v946, 64
    %v955 = vpop.permute.xlu0 %954
    %957 = vrot.lane.b32.xlu0 %v952, 32
    %v958 = vpop.permute.xlu0 %957
    %959 = vrot.lane.b32.xlu0 %v955, 32
    %v960 = vpop.permute.xlu0 %959
    %970 = vst.msk [vmem:[#allocation2] sm:$0xff] %vm166, %v269
    %971 = vst.msk [vmem:[#allocation2 + $0x8] sm:$0xff] %vm166, %v367
    %972 = vst.msk [vmem:[#allocation2 + $0x10] sm:$0xff] %vm166, %v465
    %973 = vst.msk [vmem:[#allocation2 + $0x18] sm:$0xff] %vm166, %v563
    %974 = vst.msk [vmem:[#allocation2 + $0x20] sm:$0xff] %vm166, %v661
    %975 = vst.msk [vmem:[#allocation2 + $0x28] sm:$0xff] %vm166, %v759
    %976 = vst.msk [vmem:[#allocation2 + $0x30] sm:$0xff] %vm166, %v857
    %977 = vst.msk [vmem:[#allocation2 + $0x38] sm:$0xff] %vm166, %v958
    %978 = vst.msk [vmem:[#allocation2 + $0x40] sm:$0xff] %vm166, %v960
    // Predicated region
    $region14: #{tpu_custom_call.1} parent=1 // pred_check
      _
    $region15: #{tpu_custom_call.1} parent=1 // pred_check_branch
      %980 = sbr.rel (0) target = $region17
    $region16: #{tpu_custom_call.1} parent=1 // pred_region
      %s982 = ssub.s32 1152, 1152
      %983 = vsyncadd [#allocation3], %s982
      %s984 = sshll.u32 [#allocation2], 4
      %s985 = int_to_ptr.vmem [resolvable:$true] %s984
      %990 = dma.vmem_to_hbm [thread:$0]  %s985, 1152, %s3, [#allocation3], 128, 128, 8
    $region17: #{tpu_custom_call.1} parent=1 // pred_fallthru
      _
    // Predicated region
    $region18: #{tpu_custom_call.1} parent=1 // pred_check
      _
    $region19: #{tpu_custom_call.1} parent=1 // pred_check_branch
      %992 = sbr.rel (0) target = $region21
    $region20: #{tpu_custom_call.1} parent=1 // pred_region
      %993 = dma.done [#allocation3], 1152
    $region21: #{tpu_custom_call.1} parent=1 // pred_fallthru
      _
    %994 = vsyncpa [#allocation3], 1

</llo_original>
